<compile_context>
chip_gen: v7x
topology: tpu7x:2x2x1
jax: 0.10.0
libtpu: 0.0.40
codegen_flags: <defaults>
</compile_context>

<pallas_src>
import functools

import jax
import jax.numpy as jnp
from jax.experimental import pallas as pl
from jax.experimental.pallas import tpu as pltpu


# -----------------------------------------------------------------------------
# Pallas kernel: one (batch, output-row) pair per (b, r) grid point, one ky tap
# per step along the "arbitrary" reduction axis.
# -----------------------------------------------------------------------------
def _conv3x3_tap_kernel(x_ref, w_ref, o_ref, *, out_w):
    ky = pl.program_id(2)

    @pl.when(ky == 0)
    def _init():
        o_ref[...] = jnp.zeros_like(o_ref)

    row = x_ref[0, 0]            # (W + 2, Cin)     bf16, padded input row r + ky
    wk = w_ref[ky]               # (3, Cin, Cout_p) bf16, taps (ky, kx = 0..2)

    acc = jnp.zeros(o_ref.shape[-2:], jnp.float32)          # (W, Cout_p)
    for kx in range(3):          # static unroll: 3 MXU matmuls, f32 accumulation
        acc += jnp.dot(row[kx:kx + out_w, :], wk[kx],
                       preferred_element_type=jnp.float32)
    o_ref[...] = o_ref[...] + acc                            # revisited f32 block


# -----------------------------------------------------------------------------
# Wrappers
# -----------------------------------------------------------------------------
def prepare_conv_weight(weight, cout_padded):
    """PyTorch (Cout, Cin, 3, 3) -> (3, 3, Cin, Cout_p) bf16. Done once (hoisted)."""
    cout = weight.shape[0]
    w = jnp.transpose(weight, (2, 3, 1, 0))                  # (3, 3, Cin, Cout)
    w = jnp.pad(w, ((0, 0), (0, 0), (0, 0), (0, cout_padded - cout)))
    return w.astype(jnp.bfloat16)


def conv3x3_nhwc_pallas(x_nchw, w_prepared, cout):
    """3x3, stride 1, padding 1, no bias. Returns NHWC (B, H, W, cout) f32."""
    B, cin, H, W = x_nchw.shape
    cout_p = w_prepared.shape[-1]

    x = jnp.transpose(x_nchw, (0, 2, 3, 1)).astype(jnp.bfloat16)   # NHWC, bf16
    xp = jnp.pad(x, ((0, 0), (1, 1), (1, 1), (0, 0)))              # conv pad = 1

    y = pl.pallas_call(
        functools.partial(_conv3x3_tap_kernel, out_w=W),
        out_shape=jax.ShapeDtypeStruct((B, H, W, cout_p), jnp.float32),
        grid=(B, H, 3),
        in_specs=[
            # padded-input row window, shifted by the tap index (fused im2col)
            pl.BlockSpec((1, 1, W + 2, cin), lambda b, r, k: (b, r + k, 0, 0)),
            # full weight with constant block index -> single DMA, VMEM-resident
            pl.BlockSpec((3, 3, cin, cout_p), lambda b, r, k: (0, 0, 0, 0)),
        ],
        out_specs=pl.BlockSpec((1, 1, W, cout_p), lambda b, r, k: (b, r, 0, 0)),
        compiler_params=pltpu.CompilerParams(
            dimension_semantics=("parallel", "parallel", "arbitrary"),
            vmem_limit_bytes=32 * 1024 * 1024),
    )(xp, w_prepared)
    # TODO(synk): for very large images, switch the per-row grid to multi-row
    # tiles with manual halo DMA (memory_space=pl.ANY + make_async_copy) to
    # amortize the ~0.35us per-step overhead.
    return y[..., :cout]                                     # drop lane padding


def pixel_unshuffle_nhwc_to_nchw(y_nhwc, r=2):
    """nn.PixelUnshuffle(r) on an NHWC tensor, returning NCHW (data movement only)."""
    # TODO(synk): the interleaved-channel scatter of PixelUnshuffle has no clean
    # BlockSpec expression, so it stays as a plain-JAX reshape/transpose.
    B, H, W, C = y_nhwc.shape
    y = y_nhwc.reshape(B, H // r, r, W // r, r, C)           # (b, h, i, w, j, c)
    y = jnp.transpose(y, (0, 5, 2, 4, 1, 3))                 # (b, c, i, j, h, w)
    return y.reshape(B, C * r * r, H // r, W // r)


def downsample_with_pixel_unshuffle(x_nchw, w_prepared, cout):
    y = conv3x3_nhwc_pallas(x_nchw, w_prepared, cout)
    return pixel_unshuffle_nhwc_to_nchw(y, 2)


# -----------------------------------------------------------------------------
# Pure-JAX reference (for correctness check only)
# -----------------------------------------------------------------------------
def _reference(x_nchw, weight):
    xq = x_nchw.astype(jnp.bfloat16).astype(jnp.float32)
    wq = weight.astype(jnp.bfloat16).astype(jnp.float32)
    y = jax.lax.conv_general_dilated(
        xq, wq, window_strides=(1, 1), padding=((1, 1), (1, 1)),
        dimension_numbers=("NCHW", "OIHW", "NCHW"),
        precision=jax.lax.Precision.HIGHEST)
    B, C, H, W = y.shape
    y = y.reshape(B, C, H // 2, 2, W // 2, 2)
    y = jnp.transpose(y, (0, 1, 3, 5, 2, 4))
    return y.reshape(B, C * 4, H // 2, W // 2)


# -----------------------------------------------------------------------------
if __name__ == "__main__":
    key = jax.random.PRNGKey(0)
    k_x, k_w = jax.random.split(key)

    # Downsample_with_PixelUnshuffle(n_feat=8) at small shapes
    B, n_feat, H, W = 2, 8, 16, 16
    cout = n_feat // 2
    cout_p = ((cout + 127) // 128) * 128                     # lane-dense stores

    x = jax.random.normal(k_x, (B, n_feat, H, W), jnp.float32)
    weight = jax.random.normal(k_w, (cout, n_feat, 3, 3), jnp.float32) * 0.05

    w_prep = prepare_conv_weight(weight, cout_p)             # hoisted, done once

    fwd = jax.jit(functools.partial(downsample_with_pixel_unshuffle, cout=cout))
    out = jax.block_until_ready(fwd(x, w_prep))

    assert out.shape == (B, 4 * cout, H // 2, W // 2), out.shape
    assert bool(jnp.all(jnp.isfinite(out)))

    ref = _reference(x, weight)
    err = float(jnp.max(jnp.abs(out - ref)))
    assert err < 1e-2, f"max abs err {err}"

    print("KERNEL_OK")
</pallas_src>

<mosaic_0001>
module attributes {stable_mosaic.version = 11 : i64} {
  func.func @_conv3x3_tap_kernel(%arg0: i32, %arg1: i32, %arg2: i32, %arg3: memref<1x1x18x8xbf16, #tpu.memory_space<vmem>>, %arg4: memref<3x3x8x128xbf16, #tpu.memory_space<vmem>>, %arg5: memref<1x1x16x128xf32, #tpu.memory_space<vmem>>) attributes {dimension_semantics = [#tpu.dimension_semantics<parallel>, #tpu.dimension_semantics<parallel>, #tpu.dimension_semantics<arbitrary>], iteration_bounds = array<i64: 2, 16, 3>, scalar_prefetch = 0 : i64, scratch_operands = 0 : i64, tpu.core_type = #tpu.core_type<tc>, window_params = [{transform_indices = @transform_0, window_bounds = array<i64: 1, 1, 18, 8>}, {pipeline_mode = #tpu.pipeline_mode<synchronous>, transform_indices = @transform_1, window_bounds = array<i64: 3, 3, 8, 128>}, {transform_indices = @transform_2, window_bounds = array<i64: 1, 1, 16, 128>}]} {
    %c0_i32 = arith.constant 0 : i32
    %0 = arith.cmpi eq, %arg2, %c0_i32 : i32
    %1 = arith.extui %0 : i1 to i32
    %c0_i32_0 = arith.constant 0 : i32
    %2 = arith.cmpi ne, %1, %c0_i32_0 : i32
    scf.if %2 {
      %cst_18 = arith.constant 0.000000e+00 : f32
      %28 = vector.broadcast %cst_18 : f32 to vector<1x1x16x128xf32>
      %c0_19 = arith.constant 0 : index
      %c0_20 = arith.constant 0 : index
      %c0_21 = arith.constant 0 : index
      %c0_22 = arith.constant 0 : index
      %29 = vector.load %arg5[%c0_19, %c0_20, %c0_21, %c0_22] : memref<1x1x16x128xf32, #tpu.memory_space<vmem>>, vector<1x1x16x128xf32>
      tpu.vector_store %arg5[%c0_19, %c0_20, %c0_21, %c0_22], %28 {strides = array<i32>} : memref<1x1x16x128xf32, #tpu.memory_space<vmem>>, vector<1x1x16x128xf32>,
    } else {
    }
    %c0 = arith.constant 0 : index
    %c0_1 = arith.constant 0 : index
    %c0_2 = arith.constant 0 : index
    %c0_3 = arith.constant 0 : index
    %3 = vector.load %arg3[%c0, %c0_1, %c0_2, %c0_3] : memref<1x1x18x8xbf16, #tpu.memory_space<vmem>>, vector<1x1x18x8xbf16>
    %4 = vector.shape_cast %3 : vector<1x1x18x8xbf16> to vector<18x8xbf16>
    %5 = arith.index_cast %arg2 : i32 to index
    %c0_4 = arith.constant 0 : index
    %c0_5 = arith.constant 0 : index
    %c0_6 = arith.constant 0 : index
    %6 = vector.load %arg4[%5, %c0_4, %c0_5, %c0_6] : memref<3x3x8x128xbf16, #tpu.memory_space<vmem>>, vector<1x3x8x128xbf16>
    %7 = vector.shape_cast %6 : vector<1x3x8x128xbf16> to vector<3x8x128xbf16>
    %cst = arith.constant 0.000000e+00 : f32
    %8 = vector.broadcast %cst : f32 to vector<16x128xf32>
    %9 = vector.extract_strided_slice %4 {offsets = [0, 0], sizes = [16, 8], strides = [1, 1]} : vector<18x8xbf16> to vector<16x8xbf16>
    %10 = vector.extract_strided_slice %7 {offsets = [0, 0, 0], sizes = [1, 8, 128], strides = [1, 1, 1]} : vector<3x8x128xbf16> to vector<1x8x128xbf16>
    %11 = vector.shape_cast %10 : vector<1x8x128xbf16> to vector<8x128xbf16>
    %cst_7 = arith.constant dense<0.000000e+00> : vector<16x128xf32>
    %12 = tpu.matmul %9, %11, %cst_7 {dimension_numbers = #tpu.dot_dimension_numbers<[1], [0], [0], [1], [0, 0, 1, 1], [], []>} : vector<16x8xbf16>, vector<8x128xbf16>, vector<16x128xf32> -> vector<16x128xf32>
    %13 = arith.addf %8, %12 : vector<16x128xf32>
    %14 = vector.extract_strided_slice %4 {offsets = [1, 0], sizes = [16, 8], strides = [1, 1]} : vector<18x8xbf16> to vector<16x8xbf16>
    %15 = vector.extract_strided_slice %7 {offsets = [1, 0, 0], sizes = [1, 8, 128], strides = [1, 1, 1]} : vector<3x8x128xbf16> to vector<1x8x128xbf16>
    %16 = vector.shape_cast %15 : vector<1x8x128xbf16> to vector<8x128xbf16>
    %cst_8 = arith.constant dense<0.000000e+00> : vector<16x128xf32>
    %17 = tpu.matmul %14, %16, %cst_8 {dimension_numbers = #tpu.dot_dimension_numbers<[1], [0], [0], [1], [0, 0, 1, 1], [], []>} : vector<16x8xbf16>, vector<8x128xbf16>, vector<16x128xf32> -> vector<16x128xf32>
    %18 = arith.addf %13, %17 : vector<16x128xf32>
    %19 = vector.extract_strided_slice %4 {offsets = [2, 0], sizes = [16, 8], strides = [1, 1]} : vector<18x8xbf16> to vector<16x8xbf16>
    %20 = vector.extract_strided_slice %7 {offsets = [2, 0, 0], sizes = [1, 8, 128], strides = [1, 1, 1]} : vector<3x8x128xbf16> to vector<1x8x128xbf16>
    %21 = vector.shape_cast %20 : vector<1x8x128xbf16> to vector<8x128xbf16>
    %cst_9 = arith.constant dense<0.000000e+00> : vector<16x128xf32>
    %22 = tpu.matmul %19, %21, %cst_9 {dimension_numbers = #tpu.dot_dimension_numbers<[1], [0], [0], [1], [0, 0, 1, 1], [], []>} : vector<16x8xbf16>, vector<8x128xbf16>, vector<16x128xf32> -> vector<16x128xf32>
    %23 = arith.addf %18, %22 : vector<16x128xf32>
    %c0_10 = arith.constant 0 : index
    %c0_11 = arith.constant 0 : index
    %c0_12 = arith.constant 0 : index
    %c0_13 = arith.constant 0 : index
    %24 = vector.load %arg5[%c0_10, %c0_11, %c0_12, %c0_13] : memref<1x1x16x128xf32, #tpu.memory_space<vmem>>, vector<1x1x16x128xf32>
    %25 = vector.shape_cast %23 : vector<16x128xf32> to vector<1x1x16x128xf32>
    %26 = arith.addf %24, %25 : vector<1x1x16x128xf32>
    %c0_14 = arith.constant 0 : index
    %c0_15 = arith.constant 0 : index
    %c0_16 = arith.constant 0 : index
    %c0_17 = arith.constant 0 : index
    %27 = vector.load %arg5[%c0_14, %c0_15, %c0_16, %c0_17] : memref<1x1x16x128xf32, #tpu.memory_space<vmem>>, vector<1x1x16x128xf32>
    tpu.vector_store %arg5[%c0_14, %c0_15, %c0_16, %c0_17], %26 {strides = array<i32>} : memref<1x1x16x128xf32, #tpu.memory_space<vmem>>, vector<1x1x16x128xf32>,
    return
  }
  func.func @transform_0(%arg0: i32, %arg1: i32, %arg2: i32) -> (i32, i32, i32, i32) {
    %0 = arith.addi %arg1, %arg2 : i32
    %c0_i32 = arith.constant 0 : i32
    %c0_i32_0 = arith.constant 0 : i32
    %c0_i32_1 = arith.constant 0 : i32
    return %arg0, %0, %c0_i32, %c0_i32_0 : i32, i32, i32, i32
  }
  func.func @transform_1(%arg0: i32, %arg1: i32, %arg2: i32) -> (i32, i32, i32, i32) {
    %c0_i32 = arith.constant 0 : i32
    %c0_i32_0 = arith.constant 0 : i32
    %c0_i32_1 = arith.constant 0 : i32
    %c0_i32_2 = arith.constant 0 : i32
    %c0_i32_3 = arith.constant 0 : i32
    return %c0_i32, %c0_i32_0, %c0_i32_1, %c0_i32_2 : i32, i32, i32, i32
  }
  func.func @transform_2(%arg0: i32, %arg1: i32, %arg2: i32) -> (i32, i32, i32, i32) {
    %c0_i32 = arith.constant 0 : i32
    %c0_i32_0 = arith.constant 0 : i32
    %c0_i32_1 = arith.constant 0 : i32
    return %arg0, %arg1, %c0_i32, %c0_i32_0 : i32, i32, i32, i32
  }
}

</mosaic_0001>

<llo_original>
// kernel: downsample_with_pixel_unshuffle.1
$region0: #{downsample_with_pixel_unshuffle.1}
  #allocation0 [shape = 'u32[]', space=smem, size = 0x4, offset = 0x4, fixed_abs, tag = 'smem constant byte address 0x4 - core index']
  #allocation1 [shape = 'u32[144,128]{1,0:T(1,128)}', space=vmem, size = 0x12000, scoped, tag = 'internal scratch']
  %s0 = inlined_call_operand.vmem [shape: bf16[2,18,18,8], index: 0, kind: input, shape index: {}]
  %s1 = inlined_call_operand.vmem [shape: bf16[3,3,8,128], index: 1, kind: input, shape index: {}]
  %s2 = inlined_call_operand.vmem [shape: f32[2,16,16,128], index: 2, kind: output, shape index: {}]
  %s3 = sld [smem:[#allocation0]]
  $region45: #{downsample_with_pixel_unshuffle.1} parent=0
    _
  %s5 = ssub.s32 1, %s3
  %s6 = scalar_select 0, %s5, %s3
  loop: start=0, step=1, limit=98
  $region2: #{downsample_with_pixel_unshuffle.1} parent=0 // loop_pre_header
    _
  $region3: #{downsample_with_pixel_unshuffle.1} parent=0 // loop_header
    %s8 = sphi 0, %s12
    %p9 = scmp.ge.s32.totalorder %s8, 98
    %s15 = sphi 0, %s34
    %s16 = sphi 0, %s30
    %s17 = sphi 0, %s26
    %s18 = sphi 0, %s15
    %s19 = sphi 0, %s16
    %s20 = sphi 0, %s17
    %s21 = sphi 0, %s18
    %s22 = sphi 0, %s19
    %s23 = sphi 0, %s20
    %s41 = sphi 0, %s43
    %s44 = sphi 0, %s41
    %s45 = sphi 0, %s44
    %s61 = sphi 0, %s45
    %s65 = sphi 0, %s65
    %s67 = sphi 0, %s65
    %s68 = sphi 0, %s67
    %s82 = sphi 0, %s68
    %s90 = sphi 0, %s92
    %s93 = sphi 0, %s90
    %s94 = sphi 0, %s93
    %s110 = sphi 0, %s94
  $region4: #{downsample_with_pixel_unshuffle.1} parent=0 // loop_header_branch
    %11 = sbr.rel (%p9) target = $region8
  $region5: #{downsample_with_pixel_unshuffle.1} parent=0 // loop_body
    %s13 = ssub.s32 %s8, 1
    %s14 = ssub.s32 %s8, 2
    %s24 = sadd.s32 1, %s17
    %p25 = scmp.ge.s32.totalorder %s24, 3
    %s26 = scalar_select %p25, 0, %s24
    %s27 = sadd.s32 1, %s16
    %s28 = scalar_select %p25, %s27, %s16
    %p29 = scmp.ge.s32.totalorder %s28, 16
    %s30 = scalar_select %p29, 0, %s28
    %s31 = sadd.s32 1, %s15
    %s32 = scalar_select %p29, %s31, %s15
    %p33 = scmp.ge.s32.totalorder %s32, 2
    %s34 = scalar_select %p33, 0, %s32
    %s35 = sadd.s32 %s16, %s17
    %s36 = sadd.s32 %s30, %s26
    %s37 = ssub.s32 %s15, %s34
    %s38 = ssub.s32 %s35, %s36
    %s39 = sor.u32 %s37, %s38
    %p40 = scmp.eq.s32.totalorder %s39, 0
    %s42 = sadd.s32 %s41, 1
    %s43 = scalar_select %p40, %s41, %s42
    %p46 = pneg %p40
    %p47 = scmp.eq.s32.totalorder %s8, 95
    %p48 = por %p46, %p47
    %p49 = scmp.ne.s32.totalorder %s41, %s44
    %p50 = scmp.eq.s32.totalorder %s8, 0
    %p51 = por %p49, %p50
    %p52 = scmp.ne.s32.totalorder %s41, %s44
    %p53 = scmp.eq.s32.totalorder %s13, 95
    %p54 = por %p52, %p53
    %p55 = scmp.ne.s32.totalorder %s44, %s45
    %p56 = scmp.eq.s32.totalorder %s13, 0
    %p57 = por %p55, %p56
    %p58 = scmp.ne.s32.totalorder %s44, %s45
    %p59 = scmp.eq.s32.totalorder %s14, 95
    %p60 = por %p58, %p59
    %p62 = scmp.ne.s32.totalorder %s45, %s61
    %p63 = scmp.eq.s32.totalorder %s14, 0
    %p64 = por %p62, %p63
    %s66 = sadd.s32 %s65, 1
    %p69 = scmp.eq.s32.totalorder %s8, 95
    %p70 = scmp.ne.s32.totalorder %s65, %s67
    %p71 = scmp.eq.s32.totalorder %s8, 0
    %p72 = por %p70, %p71
    %p73 = scmp.ne.s32.totalorder %s65, %s67
    %p74 = scmp.eq.s32.totalorder %s13, 95
    %p75 = por %p73, %p74
    %p76 = scmp.ne.s32.totalorder %s67, %s68
    %p77 = scmp.eq.s32.totalorder %s13, 0
    %p78 = por %p76, %p77
    %p79 = scmp.ne.s32.totalorder %s67, %s68
    %p80 = scmp.eq.s32.totalorder %s14, 95
    %p81 = por %p79, %p80
    %p83 = scmp.ne.s32.totalorder %s68, %s82
    %p84 = scmp.eq.s32.totalorder %s14, 0
    %p85 = por %p83, %p84
    %s86 = ssub.s32 %s15, %s34
    %s87 = ssub.s32 %s16, %s30
    %s88 = sor.u32 %s86, %s87
    %p89 = scmp.eq.s32.totalorder %s88, 0
    %s91 = sadd.s32 %s90, 1
    %s92 = scalar_select %p89, %s90, %s91
    %p95 = pneg %p89
    %p96 = scmp.eq.s32.totalorder %s8, 95
    %p97 = por %p95, %p96
    %p98 = scmp.ne.s32.totalorder %s90, %s93
    %p99 = scmp.eq.s32.totalorder %s8, 0
    %p100 = por %p98, %p99
    %p101 = scmp.ne.s32.totalorder %s90, %s93
    %p102 = scmp.eq.s32.totalorder %s13, 95
    %p103 = por %p101, %p102
    %p104 = scmp.ne.s32.totalorder %s93, %s94
    %p105 = scmp.eq.s32.totalorder %s13, 0
    %p106 = por %p104, %p105
    %p107 = scmp.ne.s32.totalorder %s93, %s94
    %p108 = scmp.eq.s32.totalorder %s14, 95
    %p109 = por %p107, %p108
    %p111 = scmp.ne.s32.totalorder %s94, %s110
    %p112 = scmp.eq.s32.totalorder %s14, 0
    %p113 = por %p111, %p112
    %p114 = scmp.le.s32.totalorder 1, %s8
    %p115 = scmp.lt.s32.totalorder %s8, 97
    %p116 = pnand %p114, %p115
    %p117 = pneg %p116
    // Predicated region
    $region9: #{downsample_with_pixel_unshuffle.1} parent=5 // pred_check
      _
    $region10: #{downsample_with_pixel_unshuffle.1} parent=5 // pred_check_branch
      %119 = sbr.rel (%p116) target = $region12
    $region11: #{downsample_with_pixel_unshuffle.1} parent=5 // pred_region
      %s120 = ssub.s32 %s8, 1
      // Predicated region
      $region13: #{downsample_with_pixel_unshuffle.1} parent=11 // pred_check
        %p121 = pneg %p78
      $region14: #{downsample_with_pixel_unshuffle.1} parent=11 // pred_check_branch
        %123 = sbr.rel (%p121) target = $region16
      $region15: #{downsample_with_pixel_unshuffle.1} parent=11 // pred_region
        _
      $region16: #{downsample_with_pixel_unshuffle.1} parent=11 // pred_fallthru
        _
    $region12: #{downsample_with_pixel_unshuffle.1} parent=5 // pred_fallthru
      _
    %p124 = scmp.lt.s32.totalorder %s8, 96
    // Predicated region
    $region17: #{downsample_with_pixel_unshuffle.1} parent=5 // pred_check
      %p125 = pneg %p124
    $region18: #{downsample_with_pixel_unshuffle.1} parent=5 // pred_check_branch
      %127 = sbr.rel (%p125) target = $region20
    $region19: #{downsample_with_pixel_unshuffle.1} parent=5 // pred_region
      // Predicated region
      $region21: #{downsample_with_pixel_unshuffle.1} parent=19 // pred_check
        %p128 = pneg %p51
      $region22: #{downsample_with_pixel_unshuffle.1} parent=19 // pred_check_branch
        %130 = sbr.rel (%p128) target = $region24
      $region23: #{downsample_with_pixel_unshuffle.1} parent=19 // pred_region
        %s131 = sadd.s32 %s16, %s17
        %p132 = scmp.lt.s32.totalorder %s15, 1
        %s133 = scalar_select %p132, %s15, 1
        %p134 = scmp.lt.s32.totalorder %s131, 17
        %s135 = scalar_select %p134, %s131, 17
        %s136 = smul.addr %s135, 3
        %s137 = smul.addr %s133, 54
        %s138 = sadd.s32 %s136, %s137
        %s139 = smul.addr %s138, 4
        %s140 = scalar_lea.vmem %s0, %s139
        %s141 = sadd.s32 %s16, %s17
      $region24: #{downsample_with_pixel_unshuffle.1} parent=19 // pred_fallthru
        _
    $region20: #{downsample_with_pixel_unshuffle.1} parent=5 // pred_fallthru
      _
    %p142 = scmp.le.s32.totalorder 1, %s8
    %p143 = scmp.lt.s32.totalorder %s8, 97
    %p144 = pnand %p142, %p143
    %p145 = pneg %p144
    // Predicated region
    $region25: #{downsample_with_pixel_unshuffle.1} parent=5 // pred_check
      _
    $region26: #{downsample_with_pixel_unshuffle.1} parent=5 // pred_check_branch
      %147 = sbr.rel (%p144) target = $region28
    $region27: #{downsample_with_pixel_unshuffle.1} parent=5 // pred_region
      %s148 = ssub.s32 %s8, 1
      %s149 = sadd.s32 %s19, %s20
      %p150 = scmp.lt.s32.totalorder %s18, 1
      %s151 = scalar_select %p150, %s18, 1
      %p152 = scmp.lt.s32.totalorder %s149, 17
      %s153 = scalar_select %p152, %s149, 17
      %s154 = smul.addr %s153, 3
      %s155 = smul.addr %s151, 54
      %s156 = sadd.s32 %s154, %s155
      %s157 = smul.addr %s156, 4
      %s158 = scalar_lea.vmem %s0, %s157
      %p159 = pneg %p57
      %p160 = pneg %p54
      %p161 = pneg %p78
      %p162 = pneg %p75
      %p163 = pneg %p106
      %p164 = pneg %p103
      %p165 = scmp.lt.s32.totalorder %s18, 1
      %s166 = scalar_select %p165, %s18, 1
      %p167 = scmp.lt.s32.totalorder %s19, 15
      %s168 = scalar_select %p167, %s19, 15
      %s169 = smul.addr %s168, 2
      %s170 = smul.addr %s166, 32
      %s171 = sadd.s32 %s169, %s170
      %s172 = smul.addr %s171, 8
      %s173 = scalar_lea.vmem %s2, %s172
      %s174 = sadd.s32 %s19, %s20
      %p175 = scmp.lt.s32.totalorder %s18, 1
      %s176 = scalar_select %p175, %s18, 1
      %p177 = scmp.lt.s32.totalorder %s174, 17
      %s178 = scalar_select %p177, %s174, 17
      %s179 = smul.addr %s178, 3
      %s180 = smul.addr %s176, 54
      %s181 = sadd.s32 %s179, %s180
      %s182 = smul.addr %s181, 4
      %s183 = scalar_lea.vmem %s0, %s182
      %s184 = sadd.s32 %s19, %s20
      %p185 = scmp.lt.s32.totalorder %s18, 1
      %s186 = scalar_select %p185, %s18, 1
      %p187 = scmp.lt.s32.totalorder %s19, 15
      %s188 = scalar_select %p187, %s19, 15
      %s189 = smul.addr %s188, 2
      %s190 = smul.addr %s186, 32
      %s191 = sadd.s32 %s189, %s190
      %s192 = smul.addr %s191, 8
      %s193 = scalar_lea.vmem %s2, %s192
      %p195 = scmp.eq.s32.totalorder %s20, 0
      // Predicated region
      $region29: #{downsample_with_pixel_unshuffle.1} parent=27 // pred_check
        %p196 = pneg %p195
      $region30: #{downsample_with_pixel_unshuffle.1} parent=27 // pred_check_branch
        %198 = sbr.rel (%p196) target = $region32
      $region31: #{downsample_with_pixel_unshuffle.1} parent=27 // pred_region
        %199 = vst [vmem:[%s193] sm:$0xff] 0.0
        %200 = vst [vmem:[%s193 + $0x8] sm:$0xff] 0.0
      $region32: #{downsample_with_pixel_unshuffle.1} parent=27 // pred_fallthru
        _
      %v201 = vld [vmem:[%s183] sm:$0xf]
      %v202 = vld [vmem:[%s183 + $0x4] sm:$0xf]
      %v203 = vld [vmem:[%s183 + $0x8] sm:$0x1]
      %s204 = smul.u32 %s20, 3
      %s205 = smul.addr %s204, 4
      %s206 = scalar_lea.vmem %s1, %s205
      %v207 = vld [vmem:[%s206] sm:$0xf]
      %v208 = vld [vmem:[%s206 + $0x4] sm:$0xf]
      %v209 = vld [vmem:[%s206 + $0x8] sm:$0xf]
      %v213 = vunpack.c.l.b16 %v201
      %v214 = vunpack.c.l.b16 %v202
      %v215 = vunpack.c.l.b16 %v203
      %v216 = vpack.c.b16 %v214, %v213
      %v217 = vpack.c.b16 %v215, %v215
      %vm218 = vsmask.f32 7424
      %v220 = vshrl.u32 %v216, 16
      %v222 = vshll.u32 %v216, 16
      %v224 = vrot.slane %v222, 1
      %v225 = vor.u32 %v220, %v224
      %v227 = vshll.u32 %v217, 16
      %v229 = vrot.slane %v227, 1
      %v230 = vsel %vm218, %v225, %v229
      %vm231 = vcmask 64512
      %v233 = vsel %vm231, %v230, 0
      %vm235 = vcmask 1043456
      %v237 = vsel %vm235, %v208, 0
      %239 = vmatprep.subr.bf16.mxu0 0
      %240 = vmatpush1.bf16.msra.mxu0 %v237
      %241 = vmatprep.subr.bf16.mxu0 0
      %242 = vmatpush1.bf16.msra.mxu0 0
      %243 = vmatprep.subr.bf16.mxu0 0
      %244 = vmatpush1.bf16.msra.mxu0 0
      %245 = vmatprep.subr.bf16.mxu0 0
      %246 = vmatpush1.bf16.msra.mxu0 0
      %247 = vmatprep.subr.bf16.mxu0 0
      %248 = vmatpush1.bf16.msra.mxu0 0
      %249 = vmatprep.subr.bf16.mxu0 0
      %250 = vmatpush1.bf16.msra.mxu0 0
      %251 = vmatprep.subr.bf16.mxu0 0
      %252 = vmatpush1.bf16.msra.mxu0 0
      %253 = vmatprep.subr.bf16.mxu0 0
      %254 = vmatpush1.bf16.msra.mxu0 0
      %255 = vmatprep.subr.bf16.mxu0 0
      %256 = vmatpush1.bf16.msra.mxu0 0
      %257 = vmatprep.subr.bf16.mxu0 0
      %258 = vmatpush1.bf16.msra.mxu0 0
      %259 = vmatprep.subr.bf16.mxu0 0
      %260 = vmatpush1.bf16.msra.mxu0 0
      %261 = vmatprep.subr.bf16.mxu0 0
      %262 = vmatpush1.bf16.msra.mxu0 0
      %263 = vmatprep.subr.bf16.mxu0 0
      %264 = vmatpush1.bf16.msra.mxu0 0
      %265 = vmatprep.subr.bf16.mxu0 0
      %266 = vmatpush1.bf16.msra.mxu0 0
      %267 = vmatprep.subr.bf16.mxu0 0
      %268 = vmatpush1.bf16.msra.mxu0 0
      %269 = vmatprep.subr.bf16.mxu0 0
      %270 = vmatpush1.bf16.msra.mxu0 0
      %271 = vmatprep.mubr.bf16.mxu0 0
      %272 = vmatmul.mubr.bf16.gmra.mrb[0].mxu0 %v233
      %v273 = vpop.f32.mrb[0].mxu0
      %v274 = vadd.f32 0.0, %v273
      %v275 = vpop.f32.mrb[0].mxu0
      %v276 = vpop.f32.mrb[0].mxu0
      %v277 = vadd.f32 0.0, %v276
      %v278 = vpop.f32.mrb[0].mxu0
      %279 = vdwg.mxu0
      %v280 = vsel %vm231, %v216, 0
      %v283 = vsel %vm235, %v207, 0
      %285 = vmatprep.subr.bf16.mxu0 0
      %286 = vmatpush1.bf16.msra.mxu0 %v283
      %287 = vmatprep.subr.bf16.mxu0 0
      %288 = vmatpush1.bf16.msra.mxu0 0
      %289 = vmatprep.subr.bf16.mxu0 0
      %290 = vmatpush1.bf16.msra.mxu0 0
      %291 = vmatprep.subr.bf16.mxu0 0
      %292 = vmatpush1.bf16.msra.mxu0 0
      %293 = vmatprep.subr.bf16.mxu0 0
      %294 = vmatpush1.bf16.msra.mxu0 0
      %295 = vmatprep.subr.bf16.mxu0 0
      %296 = vmatpush1.bf16.msra.mxu0 0
      %297 = vmatprep.subr.bf16.mxu0 0
      %298 = vmatpush1.bf16.msra.mxu0 0
      %299 = vmatprep.subr.bf16.mxu0 0
      %300 = vmatpush1.bf16.msra.mxu0 0
      %301 = vmatprep.subr.bf16.mxu0 0
      %302 = vmatpush1.bf16.msra.mxu0 0
      %303 = vmatprep.subr.bf16.mxu0 0
      %304 = vmatpush1.bf16.msra.mxu0 0
      %305 = vmatprep.subr.bf16.mxu0 0
      %306 = vmatpush1.bf16.msra.mxu0 0
      %307 = vmatprep.subr.bf16.mxu0 0
      %308 = vmatpush1.bf16.msra.mxu0 0
      %309 = vmatprep.subr.bf16.mxu0 0
      %310 = vmatpush1.bf16.msra.mxu0 0
      %311 = vmatprep.subr.bf16.mxu0 0
      %312 = vmatpush1.bf16.msra.mxu0 0
      %313 = vmatprep.subr.bf16.mxu0 0
      %314 = vmatpush1.bf16.msra.mxu0 0
      %315 = vmatprep.subr.bf16.mxu0 0
      %316 = vmatpush1.bf16.msra.mxu0 0
      %317 = vmatprep.mubr.bf16.mxu0 0
      %318 = vmatmul.mubr.bf16.gmra.mrb[0].mxu0 %v280
      %v319 = vpop.f32.mrb[0].mxu0
      %v320 = vadd.f32 %v274, %v319
      %v321 = vpop.f32.mrb[0].mxu0
      %v322 = vpop.f32.mrb[0].mxu0
      %v323 = vadd.f32 %v277, %v322
      %v324 = vpop.f32.mrb[0].mxu0
      %325 = vdwg.mxu0
      %vm326 = vcmask 1046528
      %v327 = vrot.slane %v216, 1
      %v328 = vrot.slane %v217, 1
      %v329 = vsel %vm326, %v327, %v328
      %v331 = vsel %vm231, %v329, 0
      %v334 = vsel %vm235, %v209, 0
      %336 = vmatprep.subr.bf16.mxu0 0
      %337 = vmatpush1.bf16.msra.mxu0 %v334
      %338 = vmatprep.subr.bf16.mxu0 0
      %339 = vmatpush1.bf16.msra.mxu0 0
      %340 = vmatprep.subr.bf16.mxu0 0
      %341 = vmatpush1.bf16.msra.mxu0 0
      %342 = vmatprep.subr.bf16.mxu0 0
      %343 = vmatpush1.bf16.msra.mxu0 0
      %344 = vmatprep.subr.bf16.mxu0 0
      %345 = vmatpush1.bf16.msra.mxu0 0
      %346 = vmatprep.subr.bf16.mxu0 0
      %347 = vmatpush1.bf16.msra.mxu0 0
      %348 = vmatprep.subr.bf16.mxu0 0
      %349 = vmatpush1.bf16.msra.mxu0 0
      %350 = vmatprep.subr.bf16.mxu0 0
      %351 = vmatpush1.bf16.msra.mxu0 0
      %352 = vmatprep.subr.bf16.mxu0 0
      %353 = vmatpush1.bf16.msra.mxu0 0
      %354 = vmatprep.subr.bf16.mxu0 0
      %355 = vmatpush1.bf16.msra.mxu0 0
      %356 = vmatprep.subr.bf16.mxu0 0
      %357 = vmatpush1.bf16.msra.mxu0 0
      %358 = vmatprep.subr.bf16.mxu0 0
      %359 = vmatpush1.bf16.msra.mxu0 0
      %360 = vmatprep.subr.bf16.mxu0 0
      %361 = vmatpush1.bf16.msra.mxu0 0
      %362 = vmatprep.subr.bf16.mxu0 0
      %363 = vmatpush1.bf16.msra.mxu0 0
      %364 = vmatprep.subr.bf16.mxu0 0
      %365 = vmatpush1.bf16.msra.mxu0 0
      %366 = vmatprep.subr.bf16.mxu0 0
      %367 = vmatpush1.bf16.msra.mxu0 0
      %368 = vmatprep.mubr.bf16.mxu0 0
      %369 = vmatmul.mubr.bf16.gmra.mrb[0].mxu0 %v331
      %v370 = vpop.f32.mrb[0].mxu0
      %v371 = vadd.f32 0.0, %v370
      %v372 = vpop.f32.mrb[0].mxu0
      %v373 = vpop.f32.mrb[0].mxu0
      %v374 = vadd.f32 0.0, %v373
      %v375 = vpop.f32.mrb[0].mxu0
      %376 = vdwg.mxu0
      %v377 = vadd.f32 %v320, %v371
      %v378 = vadd.f32 %v323, %v374
      %v379 = vld [vmem:[%s193] sm:$0xff]
      %v380 = vld [vmem:[%s193 + $0x8] sm:$0xff]
      %v381 = vadd.f32 %v379, %v377
      %v382 = vadd.f32 %v380, %v378
      %383 = vst [vmem:[%s193] sm:$0xff] %v381
      %384 = vst [vmem:[%s193 + $0x8] sm:$0xff] %v382
      %p385 = scmp.lt.s32.totalorder %s18, 1
      %s386 = scalar_select %p385, %s18, 1
      %p387 = scmp.lt.s32.totalorder %s19, 15
      %s388 = scalar_select %p387, %s19, 15
      %s389 = smul.addr %s388, 2
      %s390 = smul.addr %s386, 32
      %s391 = sadd.s32 %s389, %s390
      %s392 = smul.addr %s391, 8
      %s393 = scalar_lea.vmem %s2, %s392
      // Predicated region
      $region33: #{downsample_with_pixel_unshuffle.1} parent=27 // pred_check
        %p394 = pneg %p103
      $region34: #{downsample_with_pixel_unshuffle.1} parent=27 // pred_check_branch
        %396 = sbr.rel (%p394) target = $region36
      $region35: #{downsample_with_pixel_unshuffle.1} parent=27 // pred_region
        _
      $region36: #{downsample_with_pixel_unshuffle.1} parent=27 // pred_fallthru
        _
    $region28: #{downsample_with_pixel_unshuffle.1} parent=5 // pred_fallthru
      _
    %p397 = scmp.le.s32.totalorder 2, %s8
    // Predicated region
    $region37: #{downsample_with_pixel_unshuffle.1} parent=5 // pred_check
      %p398 = pneg %p397
    $region38: #{downsample_with_pixel_unshuffle.1} parent=5 // pred_check_branch
      %400 = sbr.rel (%p398) target = $region40
    $region39: #{downsample_with_pixel_unshuffle.1} parent=5 // pred_region
      %s401 = ssub.s32 %s8, 2
      // Predicated region
      $region41: #{downsample_with_pixel_unshuffle.1} parent=39 // pred_check
        %p402 = pneg %p109
      $region42: #{downsample_with_pixel_unshuffle.1} parent=39 // pred_check_branch
        %404 = sbr.rel (%p402) target = $region44
      $region43: #{downsample_with_pixel_unshuffle.1} parent=39 // pred_region
        %p405 = scmp.lt.s32.totalorder %s21, 1
        %s406 = scalar_select %p405, %s21, 1
        %p407 = scmp.lt.s32.totalorder %s22, 15
        %s408 = scalar_select %p407, %s22, 15
        %s409 = smul.addr %s408, 2
        %s410 = smul.addr %s406, 32
        %s411 = sadd.s32 %s409, %s410
        %s412 = smul.addr %s411, 8
        %s413 = scalar_lea.vmem %s2, %s412
      $region44: #{downsample_with_pixel_unshuffle.1} parent=39 // pred_fallthru
        _
    $region40: #{downsample_with_pixel_unshuffle.1} parent=5 // pred_fallthru
      _
  $region6: #{downsample_with_pixel_unshuffle.1} parent=0 // loop_footer
    %s12 = sadd.s32 1, %s8
  $region7: #{downsample_with_pixel_unshuffle.1} parent=0 // loop_footer_branch
    %7 = sbr.rel target = $region3
  $region8: #{downsample_with_pixel_unshuffle.1} parent=0 // loop_exit
    _

</llo_original>
